<compile_context>
chip_gen: v7x
topology: tpu7x:2x2x1
jax: 0.10.0
libtpu: 0.0.40
codegen_flags: <defaults>
</compile_context>

<pallas_src>
import numpy as np
import jax
import jax.numpy as jnp
from jax.experimental import pallas as pl
from jax.experimental.pallas import tpu as pltpu

C1, C2, H = 16, 32, 64          # fixed by the PyTorch module
H_PAD = 128                     # fc1 hidden (64) padded to a full lane width


def _round_up(v, m):
    return ((v + m - 1) // m) * m


def cnn_kernel(x_ref, k1_ref, w2_ref, b2_ref, wf1_ref, bf1_ref, wf2_ref,
               bf2_ref, out_ref):
    """One batch tile through the whole net: 4 MXU matmuls (bf16 in, f32 acc)."""
    m1 = w2_ref.shape[0]                        # C1 * L2  (== 128 at input_size=16)

    # conv1 + bias + ReLU + MaxPool1d(2) fused into ONE matmul: cols [0:m1) are the
    # even pool slots, [m1:2*m1) the odd slots; the ones-column of x carries the
    # conv1 bias (valid since max(a+b, c+b) == max(a,c)+b and relu/max commute).
    x = x_ref[...].astype(jnp.bfloat16)         # (TILE_B, L_IN)
    pre = jnp.dot(x, k1_ref[...], preferred_element_type=jnp.float32)
    hp = jnp.maximum(jnp.maximum(pre[:, :m1], pre[:, m1:]), 0.0)

    # conv2 + bias + ReLU: (TILE_B, C1*L2) @ (C1*L2, C2*L2)
    h2 = jnp.maximum(
        jnp.dot(hp.astype(jnp.bfloat16), w2_ref[...],
                preferred_element_type=jnp.float32) + b2_ref[...], 0.0)

    # fc1 + ReLU: (TILE_B, C2*L2) @ (C2*L2, H_PAD)  (padded cols are exact zeros)
    a1 = jnp.maximum(
        jnp.dot(h2.astype(jnp.bfloat16), wf1_ref[...],
                preferred_element_type=jnp.float32) + bf1_ref[...], 0.0)

    # fc2: (TILE_B, H_PAD) @ (H_PAD, N_PAD) -> lane-dense (128-wide) store
    out = jnp.dot(a1.astype(jnp.bfloat16), wf2_ref[...],
                  preferred_element_type=jnp.float32) + bf2_ref[...]
    out_ref[...] = out.astype(out_ref.dtype)


def _build_consts(params, input_size, num_classes):
    """Fuse conv taps / pool selectors / flatten order into dense matrices.

    Built once (host-side numpy) at parameter-load time.  Weight matrices are
    cast to bf16 (MXU-native); bias rows stay f32.
    """
    L = input_size
    L2 = L // 2
    M1 = C1 * L2
    L_IN = _round_up(L + 1, 128)             # lane-padded x; col L is the ones column
    N_PAD = max(128, _round_up(num_classes, 128))

    w1 = np.asarray(params["w1"], np.float32).reshape(C1, 3)
    b1 = np.asarray(params["b1"], np.float32)
    w2 = np.asarray(params["w2"], np.float32)            # (C2, C1, 3)
    b2 = np.asarray(params["b2"], np.float32)
    wfc1 = np.asarray(params["wfc1"], np.float32)        # (H, C2*L2)
    bfc1 = np.asarray(params["bfc1"], np.float32)
    wfc2 = np.asarray(params["wfc2"], np.float32)        # (num_classes, H)
    bfc2 = np.asarray(params["bfc2"], np.float32)

    # conv1 shift selectors S1[k, m, l] = [m == l + k - 1]  (padding=1)
    m = np.arange(L)
    S1 = np.stack([(m[:, None] == (m[None, :] + k - 1)).astype(np.float32)
                   for k in range(3)])                                   # (3, L, L)
    W1full = np.einsum("ck,kml->mcl", w1, S1)                            # (L, C1, L)
    K1 = np.zeros((L_IN, 2 * M1), np.float32)
    K1[:L, :M1] = W1full[:, :, 0::2].reshape(L, M1)                      # pool slot 0
    K1[:L, M1:] = W1full[:, :, 1::2].reshape(L, M1)                      # pool slot 1
    K1[L, :M1] = np.repeat(b1, L2)                                       # bias (ones col)
    K1[L, M1:] = np.repeat(b1, L2)

    # conv2 on the pooled length; rows (c1*L2 + m), cols (c2*L2 + l2) -> matches
    # torch's channel-major x.view(B, -1) flatten.
    m2 = np.arange(L2)
    S2 = np.stack([(m2[:, None] == (m2[None, :] + k - 1)).astype(np.float32)
                   for k in range(3)])                                   # (3, L2, L2)
    W2big = np.einsum("ock,kml->cmol", w2, S2).reshape(M1, C2 * L2)
    b2_row = np.repeat(b2, L2).reshape(1, C2 * L2)

    # fc1 / fc2 padded to full lane widths (zero pads contribute nothing).
    Wf1 = np.zeros((C2 * L2, H_PAD), np.float32)
    Wf1[:, :H] = wfc1.T
    bf1_row = np.zeros((1, H_PAD), np.float32)
    bf1_row[0, :H] = bfc1
    Wf2 = np.zeros((H_PAD, N_PAD), np.float32)
    Wf2[:H, :num_classes] = wfc2.T
    bf2_row = np.zeros((1, N_PAD), np.float32)
    bf2_row[0, :num_classes] = bfc2

    consts = [
        jnp.asarray(K1, jnp.bfloat16),        # MXU-native weight dtypes
        jnp.asarray(W2big, jnp.bfloat16),
        jnp.asarray(b2_row, jnp.float32),     # biases stay f32 (post-accumulate add)
        jnp.asarray(Wf1, jnp.bfloat16),
        jnp.asarray(bf1_row, jnp.float32),
        jnp.asarray(Wf2, jnp.bfloat16),
        jnp.asarray(bf2_row, jnp.float32),
    ]
    return consts, L_IN, N_PAD


def make_cnn_forward(params, input_size, num_classes, *, single_buffer_weights=False):
    """Precompute fused constants ONCE and return a jitted forward(x) closure."""
    consts, L_IN, N_PAD = _build_consts(params, input_size, num_classes)
    L = input_size
    L2 = L // 2
    M1 = C1 * L2
    weight_bytes = sum(int(c.size) * c.dtype.itemsize for c in consts)

    # Grid-invariant weight specs (index_map constant across the grid -> VMEM
    # resident).  Single-buffering frees the 2x double-buffer copy; only matters
    # for large L / v7x headroom, so it is opt-in.
    if single_buffer_weights:
        const_specs = [pl.BlockSpec(c.shape, lambda i: (0, 0),
                                    pipeline_mode=pl.Buffered(1)) for c in consts]
    else:
        const_specs = [pl.BlockSpec(c.shape, lambda i: (0, 0)) for c in consts]

    @jax.jit
    def forward(x):
        x2 = jnp.asarray(x, jnp.float32).reshape(-1, L)
        B = x2.shape[0]
        B8 = _round_up(B, 8)

        # Batch tiling: batch rides the MXU sublane (M) axis.  Cap 512 rows/tile to
        # amortize the ~0.35us/step overhead; for B >= 16 force >= 2 grid steps so
        # ("parallel",) can shard the batch across v7x's two TensorCores.
        if B8 >= 16:
            tile_b = min(512, _round_up(pl.cdiv(B8, 2), 8))
        else:
            tile_b = B8
        nb = pl.cdiv(B8, tile_b)

        # Lane-pad x to L_IN (lane-dense first matmul) and add the ones column that
        # carries the conv1 bias.  Batch is padded only to a multiple of 8 (<=7
        # rows); any ragged last tile is handled by the pl.cdiv grid + masked stores.
        xp = jnp.pad(x2, ((0, B8 - B), (0, L_IN - L)))
        xp = xp.at[:, L].set(1.0)

        flops = 2 * nb * tile_b * (L_IN * 2 * M1 + M1 * (C2 * L2)
                                   + (C2 * L2) * H_PAD + H_PAD * N_PAD)
        bytes_accessed = int(B8 * L_IN * 4 + weight_bytes + B8 * N_PAD * 4)

        out = pl.pallas_call(
            cnn_kernel,
            out_shape=jax.ShapeDtypeStruct((B8, N_PAD), jnp.float32),
            grid=(nb,),
            in_specs=[pl.BlockSpec((tile_b, L_IN), lambda i: (i, 0))] + const_specs,
            out_specs=pl.BlockSpec((tile_b, N_PAD), lambda i: (i, 0)),
            compiler_params=pltpu.CompilerParams(
                dimension_semantics=("parallel",),
                vmem_limit_bytes=32 * 1024 * 1024,
            ),
            cost_estimate=pl.CostEstimate(
                flops=int(flops), transcendentals=0,
                bytes_accessed=bytes_accessed),
        )(xp, *consts)
        return out[:B, :num_classes]

    return forward


def cnn_forward_reference(x, params, input_size, num_classes):
    """Pure-JAX f32 reference mirroring the PyTorch forward exactly."""
    B = x.shape[0]
    L = input_size
    xp = jnp.pad(x.reshape(B, 1, L), ((0, 0), (0, 0), (1, 1)))
    cols1 = jnp.stack([xp[:, :, k:k + L] for k in range(3)], axis=-1)        # (B,1,L,3)
    h1 = jnp.einsum("bilk,oik->bol", cols1, params["w1"]) + params["b1"][None, :, None]
    h1 = jax.nn.relu(h1)
    hp = jnp.max(h1.reshape(B, 16, L // 2, 2), axis=-1)                      # MaxPool1d(2)
    hpp = jnp.pad(hp, ((0, 0), (0, 0), (1, 1)))
    cols2 = jnp.stack([hpp[:, :, k:k + L // 2] for k in range(3)], axis=-1)  # (B,16,L2,3)
    h2 = jax.nn.relu(jnp.einsum("bilk,oik->bol", cols2, params["w2"])
                     + params["b2"][None, :, None])
    flat = h2.reshape(B, -1)                                                 # channel-major
    a1 = jax.nn.relu(flat @ params["wfc1"].T + params["bfc1"])
    return a1 @ params["wfc2"].T + params["bfc2"]


def init_params(key, input_size, num_classes):
    F = input_size // 2 * 32
    ks = jax.random.split(key, 8)

    def uinit(k, shape, fan_in):
        bound = 1.0 / np.sqrt(fan_in)
        return jax.random.uniform(k, shape, jnp.float32, -bound, bound)

    return {
        "w1": uinit(ks[0], (16, 1, 3), 3),
        "b1": uinit(ks[1], (16,), 3),
        "w2": uinit(ks[2], (32, 16, 3), 16 * 3),
        "b2": uinit(ks[3], (32,), 16 * 3),
        "wfc1": uinit(ks[4], (64, F), F),
        "bfc1": uinit(ks[5], (64,), F),
        "wfc2": uinit(ks[6], (num_classes, 64), 64),
        "bfc2": uinit(ks[7], (num_classes,), 64),
    }


if __name__ == "__main__":
    INPUT_SIZE = 16
    NUM_CLASSES = 4
    BATCH = 2

    key = jax.random.PRNGKey(0)
    pkey, xkey = jax.random.split(key)
    params = init_params(pkey, INPUT_SIZE, NUM_CLASSES)
    x = jax.random.normal(xkey, (BATCH, INPUT_SIZE), jnp.float32)

    forward = make_cnn_forward(params, INPUT_SIZE, NUM_CLASSES)
    out = jax.block_until_ready(forward(x))

    ref = jax.block_until_ready(cnn_forward_reference(x, params, INPUT_SIZE, NUM_CLASSES))
    assert out.shape == (BATCH, NUM_CLASSES)
    # bf16 matmul operands (f32 accumulation) vs. the f32 reference -> bf16-level tol.
    assert np.allclose(np.asarray(out), np.asarray(ref), rtol=3e-2, atol=3e-2), (
        "Pallas output mismatch vs reference")

    print("KERNEL_OK")
</pallas_src>

<mosaic_0001>
module attributes {stable_mosaic.version = 11 : i64} {
  func.func @cnn_kernel(%arg0: i32, %arg1: memref<8x128xf32, #tpu.memory_space<vmem>>, %arg2: memref<128x256xbf16, #tpu.memory_space<vmem>>, %arg3: memref<128x256xbf16, #tpu.memory_space<vmem>>, %arg4: memref<1x256xf32, #tpu.memory_space<vmem>>, %arg5: memref<256x128xbf16, #tpu.memory_space<vmem>>, %arg6: memref<1x128xf32, #tpu.memory_space<vmem>>, %arg7: memref<128x128xbf16, #tpu.memory_space<vmem>>, %arg8: memref<1x128xf32, #tpu.memory_space<vmem>>, %arg9: memref<8x128xf32, #tpu.memory_space<vmem>>) attributes {dimension_semantics = [#tpu.dimension_semantics<parallel>], iteration_bounds = array<i64: 1>, scalar_prefetch = 0 : i64, scratch_operands = 0 : i64, tpu.core_type = #tpu.core_type<tc>, window_params = [{transform_indices = @transform_0, window_bounds = array<i64: 8, 128>}, {pipeline_mode = #tpu.pipeline_mode<synchronous>, transform_indices = @transform_1, window_bounds = array<i64: 128, 256>}, {pipeline_mode = #tpu.pipeline_mode<synchronous>, transform_indices = @transform_2, window_bounds = array<i64: 128, 256>}, {pipeline_mode = #tpu.pipeline_mode<synchronous>, transform_indices = @transform_3, window_bounds = array<i64: 1, 256>}, {pipeline_mode = #tpu.pipeline_mode<synchronous>, transform_indices = @transform_4, window_bounds = array<i64: 256, 128>}, {pipeline_mode = #tpu.pipeline_mode<synchronous>, transform_indices = @transform_5, window_bounds = array<i64: 1, 128>}, {pipeline_mode = #tpu.pipeline_mode<synchronous>, transform_indices = @transform_6, window_bounds = array<i64: 128, 128>}, {pipeline_mode = #tpu.pipeline_mode<synchronous>, transform_indices = @transform_7, window_bounds = array<i64: 1, 128>}, {transform_indices = @transform_8, window_bounds = array<i64: 8, 128>}]} {
    %c0 = arith.constant 0 : index
    %c0_0 = arith.constant 0 : index
    %0 = vector.load %arg1[%c0, %c0_0] : memref<8x128xf32, #tpu.memory_space<vmem>>, vector<8x128xf32>
    %1 = arith.truncf %0 : vector<8x128xf32> to vector<8x128xbf16>
    %c0_1 = arith.constant 0 : index
    %c0_2 = arith.constant 0 : index
    %2 = vector.load %arg2[%c0_1, %c0_2] : memref<128x256xbf16, #tpu.memory_space<vmem>>, vector<128x256xbf16>
    %cst = arith.constant dense<0.000000e+00> : vector<8x256xf32>
    %3 = tpu.matmul %1, %2, %cst {dimension_numbers = #tpu.dot_dimension_numbers<[1], [0], [0], [1], [0, 0, 1, 1], [], []>} : vector<8x128xbf16>, vector<128x256xbf16>, vector<8x256xf32> -> vector<8x256xf32>
    %4 = vector.extract_strided_slice %3 {offsets = [0, 0], sizes = [8, 128], strides = [1, 1]} : vector<8x256xf32> to vector<8x128xf32>
    %5 = vector.extract_strided_slice %3 {offsets = [0, 128], sizes = [8, 128], strides = [1, 1]} : vector<8x256xf32> to vector<8x128xf32>
    %6 = arith.maximumf %4, %5 : vector<8x128xf32>
    %cst_3 = arith.constant 0.000000e+00 : f32
    %7 = vector.broadcast %cst_3 : f32 to vector<8x128xf32>
    %8 = arith.maximumf %6, %7 : vector<8x128xf32>
    %9 = arith.truncf %8 : vector<8x128xf32> to vector<8x128xbf16>
    %c0_4 = arith.constant 0 : index
    %c0_5 = arith.constant 0 : index
    %10 = vector.load %arg3[%c0_4, %c0_5] : memref<128x256xbf16, #tpu.memory_space<vmem>>, vector<128x256xbf16>
    %cst_6 = arith.constant dense<0.000000e+00> : vector<8x256xf32>
    %11 = tpu.matmul %9, %10, %cst_6 {dimension_numbers = #tpu.dot_dimension_numbers<[1], [0], [0], [1], [0, 0, 1, 1], [], []>} : vector<8x128xbf16>, vector<128x256xbf16>, vector<8x256xf32> -> vector<8x256xf32>
    %c0_7 = arith.constant 0 : index
    %c0_8 = arith.constant 0 : index
    %12 = vector.load %arg4[%c0_7, %c0_8] : memref<1x256xf32, #tpu.memory_space<vmem>>, vector<1x256xf32>
    %13 = vector.broadcast %12 : vector<1x256xf32> to vector<8x256xf32>
    %14 = arith.addf %11, %13 : vector<8x256xf32>
    %cst_9 = arith.constant 0.000000e+00 : f32
    %15 = vector.broadcast %cst_9 : f32 to vector<8x256xf32>
    %16 = arith.maximumf %14, %15 : vector<8x256xf32>
    %17 = arith.truncf %16 : vector<8x256xf32> to vector<8x256xbf16>
    %c0_10 = arith.constant 0 : index
    %c0_11 = arith.constant 0 : index
    %18 = vector.load %arg5[%c0_10, %c0_11] : memref<256x128xbf16, #tpu.memory_space<vmem>>, vector<256x128xbf16>
    %cst_12 = arith.constant dense<0.000000e+00> : vector<8x128xf32>
    %19 = tpu.matmul %17, %18, %cst_12 {dimension_numbers = #tpu.dot_dimension_numbers<[1], [0], [0], [1], [0, 0, 1, 1], [], []>} : vector<8x256xbf16>, vector<256x128xbf16>, vector<8x128xf32> -> vector<8x128xf32>
    %c0_13 = arith.constant 0 : index
    %c0_14 = arith.constant 0 : index
    %20 = vector.load %arg6[%c0_13, %c0_14] : memref<1x128xf32, #tpu.memory_space<vmem>>, vector<1x128xf32>
    %21 = vector.broadcast %20 : vector<1x128xf32> to vector<8x128xf32>
    %22 = arith.addf %19, %21 : vector<8x128xf32>
    %cst_15 = arith.constant 0.000000e+00 : f32
    %23 = vector.broadcast %cst_15 : f32 to vector<8x128xf32>
    %24 = arith.maximumf %22, %23 : vector<8x128xf32>
    %25 = arith.truncf %24 : vector<8x128xf32> to vector<8x128xbf16>
    %c0_16 = arith.constant 0 : index
    %c0_17 = arith.constant 0 : index
    %26 = vector.load %arg7[%c0_16, %c0_17] : memref<128x128xbf16, #tpu.memory_space<vmem>>, vector<128x128xbf16>
    %cst_18 = arith.constant dense<0.000000e+00> : vector<8x128xf32>
    %27 = tpu.matmul %25, %26, %cst_18 {dimension_numbers = #tpu.dot_dimension_numbers<[1], [0], [0], [1], [0, 0, 1, 1], [], []>} : vector<8x128xbf16>, vector<128x128xbf16>, vector<8x128xf32> -> vector<8x128xf32>
    %c0_19 = arith.constant 0 : index
    %c0_20 = arith.constant 0 : index
    %28 = vector.load %arg8[%c0_19, %c0_20] : memref<1x128xf32, #tpu.memory_space<vmem>>, vector<1x128xf32>
    %29 = vector.broadcast %28 : vector<1x128xf32> to vector<8x128xf32>
    %30 = arith.addf %27, %29 : vector<8x128xf32>
    %c0_21 = arith.constant 0 : index
    %c0_22 = arith.constant 0 : index
    %31 = vector.load %arg9[%c0_21, %c0_22] : memref<8x128xf32, #tpu.memory_space<vmem>>, vector<8x128xf32>
    tpu.vector_store %arg9[%c0_21, %c0_22], %30 {strides = array<i32>} : memref<8x128xf32, #tpu.memory_space<vmem>>, vector<8x128xf32>,
    return
  }
  func.func @transform_0(%arg0: i32) -> (i32, i32) {
    %c0_i32 = arith.constant 0 : i32
    %c0_i32_0 = arith.constant 0 : i32
    return %arg0, %c0_i32 : i32, i32
  }
  func.func @transform_1(%arg0: i32) -> (i32, i32) {
    %c0_i32 = arith.constant 0 : i32
    %c0_i32_0 = arith.constant 0 : i32
    %c0_i32_1 = arith.constant 0 : i32
    return %c0_i32, %c0_i32_0 : i32, i32
  }
  func.func @transform_2(%arg0: i32) -> (i32, i32) {
    %c0_i32 = arith.constant 0 : i32
    %c0_i32_0 = arith.constant 0 : i32
    %c0_i32_1 = arith.constant 0 : i32
    return %c0_i32, %c0_i32_0 : i32, i32
  }
  func.func @transform_3(%arg0: i32) -> (i32, i32) {
    %c0_i32 = arith.constant 0 : i32
    %c0_i32_0 = arith.constant 0 : i32
    %c0_i32_1 = arith.constant 0 : i32
    return %c0_i32, %c0_i32_0 : i32, i32
  }
  func.func @transform_4(%arg0: i32) -> (i32, i32) {
    %c0_i32 = arith.constant 0 : i32
    %c0_i32_0 = arith.constant 0 : i32
    %c0_i32_1 = arith.constant 0 : i32
    return %c0_i32, %c0_i32_0 : i32, i32
  }
  func.func @transform_5(%arg0: i32) -> (i32, i32) {
    %c0_i32 = arith.constant 0 : i32
    %c0_i32_0 = arith.constant 0 : i32
    %c0_i32_1 = arith.constant 0 : i32
    return %c0_i32, %c0_i32_0 : i32, i32
  }
  func.func @transform_6(%arg0: i32) -> (i32, i32) {
    %c0_i32 = arith.constant 0 : i32
    %c0_i32_0 = arith.constant 0 : i32
    %c0_i32_1 = arith.constant 0 : i32
    return %c0_i32, %c0_i32_0 : i32, i32
  }
  func.func @transform_7(%arg0: i32) -> (i32, i32) {
    %c0_i32 = arith.constant 0 : i32
    %c0_i32_0 = arith.constant 0 : i32
    %c0_i32_1 = arith.constant 0 : i32
    return %c0_i32, %c0_i32_0 : i32, i32
  }
  func.func @transform_8(%arg0: i32) -> (i32, i32) {
    %c0_i32 = arith.constant 0 : i32
    %c0_i32_0 = arith.constant 0 : i32
    return %arg0, %c0_i32 : i32, i32
  }
}

</mosaic_0001>

<llo_original>
// kernel: forward.1
$region0: #{forward.1}
  #allocation0 [shape = 'u32[]', space=smem, size = 0x4, offset = 0x4, fixed_abs, tag = 'smem constant byte address 0x4 - core index']
  #allocation1 [shape = 'u32[144,128]{1,0:T(1,128)}', space=vmem, size = 0x12000, scoped, tag = 'internal scratch']
  %s0 = inlined_call_operand.vmem [shape: f32[8,128], index: 0, kind: input, shape index: {}]
  %s1 = inlined_call_operand.vmem [shape: bf16[128,256], index: 1, kind: input, shape index: {}]
  %s2 = inlined_call_operand.vmem [shape: bf16[128,256], index: 2, kind: input, shape index: {}]
  %s3 = inlined_call_operand.vmem [shape: f32[1,256], index: 3, kind: input, shape index: {}]
  %s4 = inlined_call_operand.vmem [shape: bf16[256,128], index: 4, kind: input, shape index: {}]
  %s5 = inlined_call_operand.vmem [shape: f32[1,128], index: 5, kind: input, shape index: {}]
  %s6 = inlined_call_operand.vmem [shape: bf16[128,128], index: 6, kind: input, shape index: {}]
  %s7 = inlined_call_operand.vmem [shape: f32[1,128], index: 7, kind: input, shape index: {}]
  %s8 = inlined_call_operand.vmem [shape: f32[8,128], index: 8, kind: output, shape index: {}]
  %s9 = sld [smem:[#allocation0]]
  $region42: #{forward.1} parent=0
    _
  %s11 = ssub.s32 1, %s9
  %s12 = scalar_select 0, %s11, %s9
  // Predicated region
  $region2: #{forward.1} parent=0 // pred_check
    _
  $region3: #{forward.1} parent=0 // pred_check_branch
    %14 = sbr.rel (0) target = $region5
  $region4: #{forward.1} parent=0 // pred_region
    _
  $region5: #{forward.1} parent=0 // pred_fallthru
    _
  // Predicated region
  $region6: #{forward.1} parent=0 // pred_check
    _
  $region7: #{forward.1} parent=0 // pred_check_branch
    %16 = sbr.rel (0) target = $region9
  $region8: #{forward.1} parent=0 // pred_region
    _
  $region9: #{forward.1} parent=0 // pred_fallthru
    _
  // Predicated region
  $region10: #{forward.1} parent=0 // pred_check
    _
  $region11: #{forward.1} parent=0 // pred_check_branch
    %18 = sbr.rel (0) target = $region13
  $region12: #{forward.1} parent=0 // pred_region
    _
  $region13: #{forward.1} parent=0 // pred_fallthru
    _
  // Predicated region
  $region14: #{forward.1} parent=0 // pred_check
    _
  $region15: #{forward.1} parent=0 // pred_check_branch
    %20 = sbr.rel (0) target = $region17
  $region16: #{forward.1} parent=0 // pred_region
    _
  $region17: #{forward.1} parent=0 // pred_fallthru
    _
  // Predicated region
  $region18: #{forward.1} parent=0 // pred_check
    _
  $region19: #{forward.1} parent=0 // pred_check_branch
    %22 = sbr.rel (0) target = $region21
  $region20: #{forward.1} parent=0 // pred_region
    _
  $region21: #{forward.1} parent=0 // pred_fallthru
    _
  // Predicated region
  $region22: #{forward.1} parent=0 // pred_check
    _
  $region23: #{forward.1} parent=0 // pred_check_branch
    %24 = sbr.rel (0) target = $region25
  $region24: #{forward.1} parent=0 // pred_region
    _
  $region25: #{forward.1} parent=0 // pred_fallthru
    _
  // Predicated region
  $region26: #{forward.1} parent=0 // pred_check
    _
  $region27: #{forward.1} parent=0 // pred_check_branch
    %26 = sbr.rel (0) target = $region29
  $region28: #{forward.1} parent=0 // pred_region
    _
  $region29: #{forward.1} parent=0 // pred_fallthru
    _
  // Predicated region
  $region30: #{forward.1} parent=0 // pred_check
    _
  $region31: #{forward.1} parent=0 // pred_check_branch
    %28 = sbr.rel (0) target = $region33
  $region32: #{forward.1} parent=0 // pred_region
    _
  $region33: #{forward.1} parent=0 // pred_fallthru
    _
  %v30 = vld [vmem:[%s0] sm:$0xff]
  %v31 = vpack.c.bf16 %v30, %v30
  %v32 = vld [vmem:[%s1] sm:$0xff]
  %v33 = vld [vmem:[%s1 + $0x8] sm:$0xff]
  %v34 = vld [vmem:[%s1 + $0x10] sm:$0xff]
  %v35 = vld [vmem:[%s1 + $0x18] sm:$0xff]
  %v36 = vld [vmem:[%s1 + $0x20] sm:$0xff]
  %v37 = vld [vmem:[%s1 + $0x28] sm:$0xff]
  %v38 = vld [vmem:[%s1 + $0x30] sm:$0xff]
  %v39 = vld [vmem:[%s1 + $0x38] sm:$0xff]
  %v40 = vld [vmem:[%s1 + $0x40] sm:$0xff]
  %v41 = vld [vmem:[%s1 + $0x48] sm:$0xff]
  %v42 = vld [vmem:[%s1 + $0x50] sm:$0xff]
  %v43 = vld [vmem:[%s1 + $0x58] sm:$0xff]
  %v44 = vld [vmem:[%s1 + $0x60] sm:$0xff]
  %v45 = vld [vmem:[%s1 + $0x68] sm:$0xff]
  %v46 = vld [vmem:[%s1 + $0x70] sm:$0xff]
  %v47 = vld [vmem:[%s1 + $0x78] sm:$0xff]
  %v64 = vunpack.c.l.b16 %v32
  %v65 = vunpack.c.h.b16 %v32
  %v66 = vunpack.c.l.b16 %v33
  %v67 = vunpack.c.h.b16 %v33
  %v68 = vunpack.c.l.b16 %v34
  %v69 = vunpack.c.h.b16 %v34
  %v70 = vunpack.c.l.b16 %v35
  %v71 = vunpack.c.h.b16 %v35
  %v72 = vunpack.c.l.b16 %v36
  %v73 = vunpack.c.h.b16 %v36
  %v74 = vunpack.c.l.b16 %v37
  %v75 = vunpack.c.h.b16 %v37
  %v76 = vunpack.c.l.b16 %v38
  %v77 = vunpack.c.h.b16 %v38
  %v78 = vunpack.c.l.b16 %v39
  %v79 = vunpack.c.h.b16 %v39
  %v80 = vunpack.c.l.b16 %v40
  %v81 = vunpack.c.h.b16 %v40
  %v82 = vunpack.c.l.b16 %v41
  %v83 = vunpack.c.h.b16 %v41
  %v84 = vunpack.c.l.b16 %v42
  %v85 = vunpack.c.h.b16 %v42
  %v86 = vunpack.c.l.b16 %v43
  %v87 = vunpack.c.h.b16 %v43
  %v88 = vunpack.c.l.b16 %v44
  %v89 = vunpack.c.h.b16 %v44
  %v90 = vunpack.c.l.b16 %v45
  %v91 = vunpack.c.h.b16 %v45
  %v92 = vunpack.c.l.b16 %v46
  %v93 = vunpack.c.h.b16 %v46
  %v94 = vunpack.c.l.b16 %v47
  %v95 = vunpack.c.h.b16 %v47
  %v96 = vpack.c.b16 %v66, %v64
  %v97 = vpack.c.b16 %v67, %v65
  %v98 = vpack.c.b16 %v70, %v68
  %v99 = vpack.c.b16 %v71, %v69
  %v100 = vpack.c.b16 %v74, %v72
  %v101 = vpack.c.b16 %v75, %v73
  %v102 = vpack.c.b16 %v78, %v76
  %v103 = vpack.c.b16 %v79, %v77
  %v104 = vpack.c.b16 %v82, %v80
  %v105 = vpack.c.b16 %v83, %v81
  %v106 = vpack.c.b16 %v86, %v84
  %v107 = vpack.c.b16 %v87, %v85
  %v108 = vpack.c.b16 %v90, %v88
  %v109 = vpack.c.b16 %v91, %v89
  %v110 = vpack.c.b16 %v94, %v92
  %v111 = vpack.c.b16 %v95, %v93
  %128 = vmatprep.subr.bf16.mxu0 %v97
  %129 = vmatpush1.bf16.msra.mxu0 %v96
  %130 = vmatprep.subr.bf16.mxu0 %v99
  %131 = vmatpush1.bf16.msra.mxu0 %v98
  %132 = vmatprep.subr.bf16.mxu0 %v101
  %133 = vmatpush1.bf16.msra.mxu0 %v100
  %134 = vmatprep.subr.bf16.mxu0 %v103
  %135 = vmatpush1.bf16.msra.mxu0 %v102
  %136 = vmatprep.subr.bf16.mxu0 %v105
  %137 = vmatpush1.bf16.msra.mxu0 %v104
  %138 = vmatprep.subr.bf16.mxu0 %v107
  %139 = vmatpush1.bf16.msra.mxu0 %v106
  %140 = vmatprep.subr.bf16.mxu0 %v109
  %141 = vmatpush1.bf16.msra.mxu0 %v108
  %142 = vmatprep.subr.bf16.mxu0 %v111
  %143 = vmatpush1.bf16.msra.mxu0 %v110
  %144 = vmatprep.subr.bf16.mxu0 0
  %145 = vmatpush1.bf16.msra.mxu0 0
  %146 = vmatprep.subr.bf16.mxu0 0
  %147 = vmatpush1.bf16.msra.mxu0 0
  %148 = vmatprep.subr.bf16.mxu0 0
  %149 = vmatpush1.bf16.msra.mxu0 0
  %150 = vmatprep.subr.bf16.mxu0 0
  %151 = vmatpush1.bf16.msra.mxu0 0
  %152 = vmatprep.subr.bf16.mxu0 0
  %153 = vmatpush1.bf16.msra.mxu0 0
  %154 = vmatprep.subr.bf16.mxu0 0
  %155 = vmatpush1.bf16.msra.mxu0 0
  %156 = vmatprep.subr.bf16.mxu0 0
  %157 = vmatpush1.bf16.msra.mxu0 0
  %158 = vmatprep.subr.bf16.mxu0 0
  %159 = vmatpush1.bf16.msra.mxu0 0
  %160 = vmatprep.mubr.bf16.mxu0 0
  %161 = vmatmul.mubr.bf16.gmra.mrb[0].mxu0 %v31
  %v162 = vpop.f32.mrb[0].mxu0
  %v163 = vadd.f32 0.0, %v162
  %v164 = vpop.f32.mrb[0].mxu0
  %v165 = vadd.f32 0.0, %v164
  %v166 = vpop.f32.mrb[0].mxu0
  %v167 = vpop.f32.mrb[0].mxu0
  %168 = vdwg.mxu0
  %v169 = vmax.f32 %v163, %v165
  %v170 = vmax.f32 %v169, 0.0
  %v171 = vpack.c.bf16 %v170, %v170
  %v172 = vld [vmem:[%s2] sm:$0xff]
  %v173 = vld [vmem:[%s2 + $0x8] sm:$0xff]
  %v174 = vld [vmem:[%s2 + $0x10] sm:$0xff]
  %v175 = vld [vmem:[%s2 + $0x18] sm:$0xff]
  %v176 = vld [vmem:[%s2 + $0x20] sm:$0xff]
  %v177 = vld [vmem:[%s2 + $0x28] sm:$0xff]
  %v178 = vld [vmem:[%s2 + $0x30] sm:$0xff]
  %v179 = vld [vmem:[%s2 + $0x38] sm:$0xff]
  %v180 = vld [vmem:[%s2 + $0x40] sm:$0xff]
  %v181 = vld [vmem:[%s2 + $0x48] sm:$0xff]
  %v182 = vld [vmem:[%s2 + $0x50] sm:$0xff]
  %v183 = vld [vmem:[%s2 + $0x58] sm:$0xff]
  %v184 = vld [vmem:[%s2 + $0x60] sm:$0xff]
  %v185 = vld [vmem:[%s2 + $0x68] sm:$0xff]
  %v186 = vld [vmem:[%s2 + $0x70] sm:$0xff]
  %v187 = vld [vmem:[%s2 + $0x78] sm:$0xff]
  %v188 = vld [vmem:[%s3] sm:$0x3]
  %v190 = vlaneseq
  %v191 = vshrl.u32 %v190, 7
  %v192 = vsub.s32 0, %v191
  %v193 = vrot.slane %v188, %v192
  %v194 = vlaneseq
  %v195 = vshrl.u32 %v194, 7
  %v196 = vsub.s32 1, %v195
  %v197 = vrot.slane %v188, %v196
  %v216 = vunpack.c.l.b16 %v172
  %v217 = vunpack.c.h.b16 %v172
  %v218 = vunpack.c.l.b16 %v173
  %v219 = vunpack.c.h.b16 %v173
  %v220 = vunpack.c.l.b16 %v174
  %v221 = vunpack.c.h.b16 %v174
  %v222 = vunpack.c.l.b16 %v175
  %v223 = vunpack.c.h.b16 %v175
  %v224 = vunpack.c.l.b16 %v176
  %v225 = vunpack.c.h.b16 %v176
  %v226 = vunpack.c.l.b16 %v177
  %v227 = vunpack.c.h.b16 %v177
  %v228 = vunpack.c.l.b16 %v178
  %v229 = vunpack.c.h.b16 %v178
  %v230 = vunpack.c.l.b16 %v179
  %v231 = vunpack.c.h.b16 %v179
  %v232 = vunpack.c.l.b16 %v180
  %v233 = vunpack.c.h.b16 %v180
  %v234 = vunpack.c.l.b16 %v181
  %v235 = vunpack.c.h.b16 %v181
  %v236 = vunpack.c.l.b16 %v182
  %v237 = vunpack.c.h.b16 %v182
  %v238 = vunpack.c.l.b16 %v183
  %v239 = vunpack.c.h.b16 %v183
  %v240 = vunpack.c.l.b16 %v184
  %v241 = vunpack.c.h.b16 %v184
  %v242 = vunpack.c.l.b16 %v185
  %v243 = vunpack.c.h.b16 %v185
  %v244 = vunpack.c.l.b16 %v186
  %v245 = vunpack.c.h.b16 %v186
  %v246 = vunpack.c.l.b16 %v187
  %v247 = vunpack.c.h.b16 %v187
  %v248 = vpack.c.b16 %v218, %v216
  %v249 = vpack.c.b16 %v219, %v217
  %v250 = vpack.c.b16 %v222, %v220
  %v251 = vpack.c.b16 %v223, %v221
  %v252 = vpack.c.b16 %v226, %v224
  %v253 = vpack.c.b16 %v227, %v225
  %v254 = vpack.c.b16 %v230, %v228
  %v255 = vpack.c.b16 %v231, %v229
  %v256 = vpack.c.b16 %v234, %v232
  %v257 = vpack.c.b16 %v235, %v233
  %v258 = vpack.c.b16 %v238, %v236
  %v259 = vpack.c.b16 %v239, %v237
  %v260 = vpack.c.b16 %v242, %v240
  %v261 = vpack.c.b16 %v243, %v241
  %v262 = vpack.c.b16 %v246, %v244
  %v263 = vpack.c.b16 %v247, %v245
  %280 = vmatprep.subr.bf16.mxu0 %v249
  %281 = vmatpush1.bf16.msra.mxu0 %v248
  %282 = vmatprep.subr.bf16.mxu0 %v251
  %283 = vmatpush1.bf16.msra.mxu0 %v250
  %284 = vmatprep.subr.bf16.mxu0 %v253
  %285 = vmatpush1.bf16.msra.mxu0 %v252
  %286 = vmatprep.subr.bf16.mxu0 %v255
  %287 = vmatpush1.bf16.msra.mxu0 %v254
  %288 = vmatprep.subr.bf16.mxu0 %v257
  %289 = vmatpush1.bf16.msra.mxu0 %v256
  %290 = vmatprep.subr.bf16.mxu0 %v259
  %291 = vmatpush1.bf16.msra.mxu0 %v258
  %292 = vmatprep.subr.bf16.mxu0 %v261
  %293 = vmatpush1.bf16.msra.mxu0 %v260
  %294 = vmatprep.subr.bf16.mxu0 %v263
  %295 = vmatpush1.bf16.msra.mxu0 %v262
  %296 = vmatprep.subr.bf16.mxu0 0
  %297 = vmatpush1.bf16.msra.mxu0 0
  %298 = vmatprep.subr.bf16.mxu0 0
  %299 = vmatpush1.bf16.msra.mxu0 0
  %300 = vmatprep.subr.bf16.mxu0 0
  %301 = vmatpush1.bf16.msra.mxu0 0
  %302 = vmatprep.subr.bf16.mxu0 0
  %303 = vmatpush1.bf16.msra.mxu0 0
  %304 = vmatprep.subr.bf16.mxu0 0
  %305 = vmatpush1.bf16.msra.mxu0 0
  %306 = vmatprep.subr.bf16.mxu0 0
  %307 = vmatpush1.bf16.msra.mxu0 0
  %308 = vmatprep.subr.bf16.mxu0 0
  %309 = vmatpush1.bf16.msra.mxu0 0
  %310 = vmatprep.subr.bf16.mxu0 0
  %311 = vmatpush1.bf16.msra.mxu0 0
  %312 = vmatprep.mubr.bf16.mxu0 0
  %313 = vmatmul.mubr.bf16.gmra.mrb[0].mxu0 %v171
  %v314 = vpop.f32.mrb[0].mxu0
  %v315 = vadd.f32 %v193, %v314
  %v316 = vpop.f32.mrb[0].mxu0
  %v317 = vadd.f32 %v197, %v316
  %v318 = vpop.f32.mrb[0].mxu0
  %v319 = vpop.f32.mrb[0].mxu0
  %320 = vdwg.mxu0
  %v321 = vmax.f32 %v315, 0.0
  %v322 = vmax.f32 %v317, 0.0
  %v323 = vpack.c.bf16 %v321, %v321
  %v324 = vpack.c.bf16 %v322, %v322
  %v325 = vld [vmem:[%s4] sm:$0xf]
  %v326 = vld [vmem:[%s4 + $0x4] sm:$0xf]
  %v327 = vld [vmem:[%s4 + $0x8] sm:$0xf]
  %v328 = vld [vmem:[%s4 + $0xc] sm:$0xf]
  %v329 = vld [vmem:[%s4 + $0x10] sm:$0xf]
  %v330 = vld [vmem:[%s4 + $0x14] sm:$0xf]
  %v331 = vld [vmem:[%s4 + $0x18] sm:$0xf]
  %v332 = vld [vmem:[%s4 + $0x1c] sm:$0xf]
  %v333 = vld [vmem:[%s4 + $0x20] sm:$0xf]
  %v334 = vld [vmem:[%s4 + $0x24] sm:$0xf]
  %v335 = vld [vmem:[%s4 + $0x28] sm:$0xf]
  %v336 = vld [vmem:[%s4 + $0x2c] sm:$0xf]
  %v337 = vld [vmem:[%s4 + $0x30] sm:$0xf]
  %v338 = vld [vmem:[%s4 + $0x34] sm:$0xf]
  %v339 = vld [vmem:[%s4 + $0x38] sm:$0xf]
  %v340 = vld [vmem:[%s4 + $0x3c] sm:$0xf]
  %v341 = vld [vmem:[%s4 + $0x40] sm:$0xf]
  %v342 = vld [vmem:[%s4 + $0x44] sm:$0xf]
  %v343 = vld [vmem:[%s4 + $0x48] sm:$0xf]
  %v344 = vld [vmem:[%s4 + $0x4c] sm:$0xf]
  %v345 = vld [vmem:[%s4 + $0x50] sm:$0xf]
  %v346 = vld [vmem:[%s4 + $0x54] sm:$0xf]
  %v347 = vld [vmem:[%s4 + $0x58] sm:$0xf]
  %v348 = vld [vmem:[%s4 + $0x5c] sm:$0xf]
  %v349 = vld [vmem:[%s4 + $0x60] sm:$0xf]
  %v350 = vld [vmem:[%s4 + $0x64] sm:$0xf]
  %v351 = vld [vmem:[%s4 + $0x68] sm:$0xf]
  %v352 = vld [vmem:[%s4 + $0x6c] sm:$0xf]
  %v353 = vld [vmem:[%s4 + $0x70] sm:$0xf]
  %v354 = vld [vmem:[%s4 + $0x74] sm:$0xf]
  %v355 = vld [vmem:[%s4 + $0x78] sm:$0xf]
  %v356 = vld [vmem:[%s4 + $0x7c] sm:$0xf]
  %v357 = vld [vmem:[%s5] sm:$0x1]
  %v359 = vlaneseq
  %v360 = vshrl.u32 %v359, 7
  %v361 = vsub.s32 0, %v360
  %v362 = vrot.slane %v357, %v361
  %v396 = vunpack.c.l.b16 %v325
  %v397 = vunpack.c.l.b16 %v326
  %v398 = vunpack.c.l.b16 %v327
  %v399 = vunpack.c.l.b16 %v328
  %v400 = vunpack.c.l.b16 %v329
  %v401 = vunpack.c.l.b16 %v330
  %v402 = vunpack.c.l.b16 %v331
  %v403 = vunpack.c.l.b16 %v332
  %v404 = vunpack.c.l.b16 %v333
  %v405 = vunpack.c.l.b16 %v334
  %v406 = vunpack.c.l.b16 %v335
  %v407 = vunpack.c.l.b16 %v336
  %v408 = vunpack.c.l.b16 %v337
  %v409 = vunpack.c.l.b16 %v338
  %v410 = vunpack.c.l.b16 %v339
  %v411 = vunpack.c.l.b16 %v340
  %v412 = vunpack.c.l.b16 %v341
  %v413 = vunpack.c.l.b16 %v342
  %v414 = vunpack.c.l.b16 %v343
  %v415 = vunpack.c.l.b16 %v344
  %v416 = vunpack.c.l.b16 %v345
  %v417 = vunpack.c.l.b16 %v346
  %v418 = vunpack.c.l.b16 %v347
  %v419 = vunpack.c.l.b16 %v348
  %v420 = vunpack.c.l.b16 %v349
  %v421 = vunpack.c.l.b16 %v350
  %v422 = vunpack.c.l.b16 %v351
  %v423 = vunpack.c.l.b16 %v352
  %v424 = vunpack.c.l.b16 %v353
  %v425 = vunpack.c.l.b16 %v354
  %v426 = vunpack.c.l.b16 %v355
  %v427 = vunpack.c.l.b16 %v356
  %v428 = vpack.c.b16 %v397, %v396
  %v429 = vpack.c.b16 %v399, %v398
  %v430 = vpack.c.b16 %v401, %v400
  %v431 = vpack.c.b16 %v403, %v402
  %v432 = vpack.c.b16 %v405, %v404
  %v433 = vpack.c.b16 %v407, %v406
  %v434 = vpack.c.b16 %v409, %v408
  %v435 = vpack.c.b16 %v411, %v410
  %v436 = vpack.c.b16 %v413, %v412
  %v437 = vpack.c.b16 %v415, %v414
  %v438 = vpack.c.b16 %v417, %v416
  %v439 = vpack.c.b16 %v419, %v418
  %v440 = vpack.c.b16 %v421, %v420
  %v441 = vpack.c.b16 %v423, %v422
  %v442 = vpack.c.b16 %v425, %v424
  %v443 = vpack.c.b16 %v427, %v426
  %460 = vmatprep.subr.bf16.mxu0 0
  %461 = vmatpush1.bf16.msra.mxu0 %v428
  %462 = vmatprep.subr.bf16.mxu0 0
  %463 = vmatpush1.bf16.msra.mxu0 %v429
  %464 = vmatprep.subr.bf16.mxu0 0
  %465 = vmatpush1.bf16.msra.mxu0 %v430
  %466 = vmatprep.subr.bf16.mxu0 0
  %467 = vmatpush1.bf16.msra.mxu0 %v431
  %468 = vmatprep.subr.bf16.mxu0 0
  %469 = vmatpush1.bf16.msra.mxu0 %v432
  %470 = vmatprep.subr.bf16.mxu0 0
  %471 = vmatpush1.bf16.msra.mxu0 %v433
  %472 = vmatprep.subr.bf16.mxu0 0
  %473 = vmatpush1.bf16.msra.mxu0 %v434
  %474 = vmatprep.subr.bf16.mxu0 0
  %475 = vmatpush1.bf16.msra.mxu0 %v435
  %476 = vmatprep.subr.bf16.mxu0 0
  %477 = vmatpush1.bf16.msra.mxu0 %v436
  %478 = vmatprep.subr.bf16.mxu0 0
  %479 = vmatpush1.bf16.msra.mxu0 %v437
  %480 = vmatprep.subr.bf16.mxu0 0
  %481 = vmatpush1.bf16.msra.mxu0 %v438
  %482 = vmatprep.subr.bf16.mxu0 0
  %483 = vmatpush1.bf16.msra.mxu0 %v439
  %484 = vmatprep.subr.bf16.mxu0 0
  %485 = vmatpush1.bf16.msra.mxu0 %v440
  %486 = vmatprep.subr.bf16.mxu0 0
  %487 = vmatpush1.bf16.msra.mxu0 %v441
  %488 = vmatprep.subr.bf16.mxu0 0
  %489 = vmatpush1.bf16.msra.mxu0 %v442
  %490 = vmatprep.subr.bf16.mxu0 0
  %491 = vmatpush1.bf16.msra.mxu0 %v443
  %492 = vmatprep.mubr.bf16.mxu0 %v324
  %493 = vmatmul.mubr.bf16.gmra.mrb[0].mxu0 %v323
  %v494 = vpop.f32.mrb[0].mxu0
  %v495 = vadd.f32 %v362, %v494
  %v496 = vpop.f32.mrb[0].mxu0
  %v497 = vpop.f32.mrb[0].mxu0
  %v498 = vpop.f32.mrb[0].mxu0
  %499 = vdwg.mxu0
  %v500 = vmax.f32 %v495, 0.0
  %v501 = vpack.c.bf16 %v500, %v500
  %v502 = vld [vmem:[%s6] sm:$0xf]
  %v503 = vld [vmem:[%s6 + $0x4] sm:$0xf]
  %v504 = vld [vmem:[%s6 + $0x8] sm:$0xf]
  %v505 = vld [vmem:[%s6 + $0xc] sm:$0xf]
  %v506 = vld [vmem:[%s6 + $0x10] sm:$0xf]
  %v507 = vld [vmem:[%s6 + $0x14] sm:$0xf]
  %v508 = vld [vmem:[%s6 + $0x18] sm:$0xf]
  %v509 = vld [vmem:[%s6 + $0x1c] sm:$0xf]
  %v510 = vld [vmem:[%s6 + $0x20] sm:$0xf]
  %v511 = vld [vmem:[%s6 + $0x24] sm:$0xf]
  %v512 = vld [vmem:[%s6 + $0x28] sm:$0xf]
  %v513 = vld [vmem:[%s6 + $0x2c] sm:$0xf]
  %v514 = vld [vmem:[%s6 + $0x30] sm:$0xf]
  %v515 = vld [vmem:[%s6 + $0x34] sm:$0xf]
  %v516 = vld [vmem:[%s6 + $0x38] sm:$0xf]
  %v517 = vld [vmem:[%s6 + $0x3c] sm:$0xf]
  %v518 = vld [vmem:[%s7] sm:$0x1]
  %v520 = vlaneseq
  %v521 = vshrl.u32 %v520, 7
  %v522 = vsub.s32 0, %v521
  %v523 = vrot.slane %v518, %v522
  %v541 = vunpack.c.l.b16 %v502
  %v542 = vunpack.c.l.b16 %v503
  %v543 = vunpack.c.l.b16 %v504
  %v544 = vunpack.c.l.b16 %v505
  %v545 = vunpack.c.l.b16 %v506
  %v546 = vunpack.c.l.b16 %v507
  %v547 = vunpack.c.l.b16 %v508
  %v548 = vunpack.c.l.b16 %v509
  %v549 = vunpack.c.l.b16 %v510
  %v550 = vunpack.c.l.b16 %v511
  %v551 = vunpack.c.l.b16 %v512
  %v552 = vunpack.c.l.b16 %v513
  %v553 = vunpack.c.l.b16 %v514
  %v554 = vunpack.c.l.b16 %v515
  %v555 = vunpack.c.l.b16 %v516
  %v556 = vunpack.c.l.b16 %v517
  %v557 = vpack.c.b16 %v542, %v541
  %v558 = vpack.c.b16 %v544, %v543
  %v559 = vpack.c.b16 %v546, %v545
  %v560 = vpack.c.b16 %v548, %v547
  %v561 = vpack.c.b16 %v550, %v549
  %v562 = vpack.c.b16 %v552, %v551
  %v563 = vpack.c.b16 %v554, %v553
  %v564 = vpack.c.b16 %v556, %v555
  %573 = vmatprep.subr.bf16.mxu0 0
  %574 = vmatpush1.bf16.msra.mxu0 %v557
  %575 = vmatprep.subr.bf16.mxu0 0
  %576 = vmatpush1.bf16.msra.mxu0 %v558
  %577 = vmatprep.subr.bf16.mxu0 0
  %578 = vmatpush1.bf16.msra.mxu0 %v559
  %579 = vmatprep.subr.bf16.mxu0 0
  %580 = vmatpush1.bf16.msra.mxu0 %v560
  %581 = vmatprep.subr.bf16.mxu0 0
  %582 = vmatpush1.bf16.msra.mxu0 %v561
  %583 = vmatprep.subr.bf16.mxu0 0
  %584 = vmatpush1.bf16.msra.mxu0 %v562
  %585 = vmatprep.subr.bf16.mxu0 0
  %586 = vmatpush1.bf16.msra.mxu0 %v563
  %587 = vmatprep.subr.bf16.mxu0 0
  %588 = vmatpush1.bf16.msra.mxu0 %v564
  %589 = vmatprep.subr.bf16.mxu0 0
  %590 = vmatpush1.bf16.msra.mxu0 0
  %591 = vmatprep.subr.bf16.mxu0 0
  %592 = vmatpush1.bf16.msra.mxu0 0
  %593 = vmatprep.subr.bf16.mxu0 0
  %594 = vmatpush1.bf16.msra.mxu0 0
  %595 = vmatprep.subr.bf16.mxu0 0
  %596 = vmatpush1.bf16.msra.mxu0 0
  %597 = vmatprep.subr.bf16.mxu0 0
  %598 = vmatpush1.bf16.msra.mxu0 0
  %599 = vmatprep.subr.bf16.mxu0 0
  %600 = vmatpush1.bf16.msra.mxu0 0
  %601 = vmatprep.subr.bf16.mxu0 0
  %602 = vmatpush1.bf16.msra.mxu0 0
  %603 = vmatprep.subr.bf16.mxu0 0
  %604 = vmatpush1.bf16.msra.mxu0 0
  %605 = vmatprep.mubr.bf16.mxu0 0
  %606 = vmatmul.mubr.bf16.gmra.mrb[0].mxu0 %v501
  %v607 = vpop.f32.mrb[0].mxu0
  %v608 = vadd.f32 %v523, %v607
  %v609 = vpop.f32.mrb[0].mxu0
  %v610 = vpop.f32.mrb[0].mxu0
  %v611 = vpop.f32.mrb[0].mxu0
  %612 = vdwg.mxu0
  %613 = vst [vmem:[%s8] sm:$0xff] %v608
  // Predicated region
  $region34: #{forward.1} parent=0 // pred_check
    _
  $region35: #{forward.1} parent=0 // pred_check_branch
    %615 = sbr.rel (0) target = $region37
  $region36: #{forward.1} parent=0 // pred_region
    _
  $region37: #{forward.1} parent=0 // pred_fallthru
    _
  // Predicated region
  $region38: #{forward.1} parent=0 // pred_check
    _
  $region39: #{forward.1} parent=0 // pred_check_branch
    %617 = sbr.rel (0) target = $region41
  $region40: #{forward.1} parent=0 // pred_region
    _
  $region41: #{forward.1} parent=0 // pred_fallthru
    _

</llo_original>
